<compile_context>
chip_gen: v6e
topology: v6e:2x2x1
jax: 0.10.0
libtpu: 0.0.40
codegen_flags: <defaults>
</compile_context>

<pallas_src>
import functools
import math

import jax
import jax.numpy as jnp
from jax.experimental import pallas as pl
from jax.experimental.pallas import tpu as pltpu


def _round_up(x, m):
    return (x + m - 1) // m * m


def _cdiv(a, b):
    return -(-a // b)


# --------------------------------------------------------------------------
# Kernel 1: fused QKV projection   y = x @ W_t + b   with W_t = W.T  (K, N)
# --------------------------------------------------------------------------
def _qkv_proj_kernel(x_ref, w_ref, b_ref, o_ref):
    # Full-K contraction per tile: no reduction grid axis, no accumulator
    # scratch, f32 accumulation on the MXU.
    acc = jnp.dot(x_ref[...], w_ref[...], preferred_element_type=jnp.float32)
    o_ref[...] = (acc + b_ref[...]).astype(o_ref.dtype)


def _choose_tn(N, K, tm, x_bpe, w_bpe, o_bpe, budget):
    """Largest N tile (full N preferred -> weight fully VMEM-resident) that
    fits the budget; falls back to a multiple-of-128 divisor of N so the
    projection output never needs column padding/slicing."""
    def cost(tn):
        return 2 * (tm * K * x_bpe + K * tn * w_bpe + tm * tn * o_bpe) + 4 * tn

    if N % 128 != 0 or cost(N) <= budget:
        return N
    cands = [t for t in range(128, N, 128) if N % t == 0]
    for t in reversed(cands):
        if cost(t) <= budget:
            return t
    return cands[0] if cands else N


def _qkv_projection(x2d, w_t, bias_f32, *, tm, out_dtype, vmem_budget=20 * 2**20):
    """x2d: (Mp, K); w_t: (K, N) [already transposed]; bias_f32: (1, N)."""
    Mp, K = x2d.shape
    K2, N = w_t.shape
    assert K2 == K and bias_f32.shape == (1, N)
    assert Mp % tm == 0

    x_bpe = jnp.dtype(x2d.dtype).itemsize
    w_bpe = jnp.dtype(w_t.dtype).itemsize
    o_bpe = jnp.dtype(out_dtype).itemsize
    tn = _choose_tn(N, K, tm, x_bpe, w_bpe, o_bpe, vmem_budget)
    grid_n, grid_m = N // tn, Mp // tm
    # TODO(synk): for very large hidden sizes (K tile no longer VMEM-friendly)
    # a K-reduction grid axis would be needed; typical TimeSformer C<=1024 fits.

    return pl.pallas_call(
        _qkv_proj_kernel,
        out_shape=jax.ShapeDtypeStruct((Mp, N), out_dtype),
        grid_spec=pltpu.PrefetchScalarGridSpec(
            num_scalar_prefetch=0,
            # N tiles outermost so the weight tile is constant across the inner
            # M loop -> W is fetched from HBM once per N tile (once total when
            # tn == N).
            grid=(grid_n, grid_m),
            in_specs=[
                pl.BlockSpec((tm, K), lambda j, i: (i, 0)),   # activations
                pl.BlockSpec((K, tn), lambda j, i: (0, j)),   # transposed weight
                pl.BlockSpec((1, tn), lambda j, i: (0, j)),   # bias (f32)
            ],
            out_specs=pl.BlockSpec((tm, tn), lambda j, i: (i, j)),
        ),
        compiler_params=pltpu.CompilerParams(
            dimension_semantics=("parallel", "parallel"),
            vmem_limit_bytes=32 * 1024 * 1024,
        ),
        cost_estimate=pl.CostEstimate(
            flops=2 * Mp * K * N,
            transcendentals=0,
            bytes_accessed=(grid_n * Mp * K * x_bpe + K * N * w_bpe
                            + Mp * N * o_bpe + 4 * N),
        ),
    )(x2d, w_t, bias_f32)


# --------------------------------------------------------------------------
# Kernel 2: causal softmax attention, heads folded into the matmul row axis
# --------------------------------------------------------------------------
def _attn_kernel(qkv_ref, mask_ref, o_ref, *, scale):
    gb, S, _, H, d = qkv_ref.shape
    SH = S * H

    blk = qkv_ref[...]                              # (gb, S, 3, H, d)
    q = blk[:, :, 0].reshape(gb, SH, d)             # rows ordered (s, h)
    k = blk[:, :, 1].reshape(gb, SH, d)
    v = blk[:, :, 2].reshape(gb, SH, d)

    # One (SH, d) x (d, SH) matmul per group; cross-head entries are removed by
    # the additive mask (combined same-head & causal), so this is equivalent to
    # H independent per-head causal attentions but with far fewer MXU pushes.
    s = jnp.einsum("gmd,gnd->gmn", q, k, preferred_element_type=jnp.float32)
    s = s * scale + mask_ref[...][None, :, :]

    m = jnp.max(s, axis=-1, keepdims=True)
    e = jnp.exp(s - m)
    l = jnp.sum(e, axis=-1, keepdims=True)
    p = e * pl.reciprocal(l, approx=True)           # EUP slot instead of divides

    ctx = jnp.einsum("gmn,gnd->gmd", p.astype(v.dtype), v,
                     preferred_element_type=jnp.float32)
    o_ref[...] = ctx.astype(o_ref.dtype)            # merged-head layout (s, h, d)


def _causal_attention(qkv5, attn_mask, *, gb, scale, out_dtype):
    """qkv5: (Bp, S, 3, H, d) view of the projection output -> (Bp, S*H, d)."""
    Bp, S, three, H, d = qkv5.shape
    assert three == 3 and Bp % gb == 0
    SH = S * H
    qkv_bpe = jnp.dtype(qkv5.dtype).itemsize
    out_bpe = jnp.dtype(out_dtype).itemsize

    return pl.pallas_call(
        functools.partial(_attn_kernel, scale=scale),
        out_shape=jax.ShapeDtypeStruct((Bp, SH, d), out_dtype),
        grid_spec=pltpu.PrefetchScalarGridSpec(
            num_scalar_prefetch=0,
            grid=(Bp // gb,),
            in_specs=[
                pl.BlockSpec((gb, S, 3, H, d), lambda b: (b, 0, 0, 0, 0)),
                pl.BlockSpec((SH, SH), lambda b: (0, 0)),     # resident mask
            ],
            out_specs=pl.BlockSpec((gb, SH, d), lambda b: (b, 0, 0)),
        ),
        compiler_params=pltpu.CompilerParams(
            dimension_semantics=("parallel",),
            vmem_limit_bytes=32 * 1024 * 1024,
        ),
        cost_estimate=pl.CostEstimate(
            flops=4 * Bp * SH * SH * d,
            transcendentals=Bp * SH * SH,
            bytes_accessed=(Bp * S * 3 * H * d * qkv_bpe
                            + Bp * SH * d * out_bpe + SH * SH * 4),
        ),
    )(qkv5, attn_mask)


# --------------------------------------------------------------------------
# Group (batch) blocking: VMEM-budget aware, megacore- and padding-friendly
# --------------------------------------------------------------------------
def _attention_group_budget(S, H, d, qkv_bpe, out_bpe, budget_bytes=20 * 2**20):
    """Max groups per attention block given ~20 MiB of VMEM working set
    (conservative for v7x's 64 MiB physical VMEM; includes native (sublane,
    lane) padding of the (H, d)-tiled qkv block and f32 score intermediates)."""
    SH = S * H
    d_pad = _round_up(d, 128)
    h_pad = _round_up(H, 32 // qkv_bpe)
    sh_pad = _round_up(SH, 32 // out_bpe)
    in_g = S * 3 * h_pad * d_pad * qkv_bpe          # double-buffered below
    out_g = sh_pad * d_pad * out_bpe
    tmp_g = 3 * SH * _round_up(SH, 128) * 4 + 2 * SH * d_pad * 4
    per_group = 2 * in_g + 2 * out_g + tmp_g
    return max(1, budget_bytes // per_group)


def _choose_group_block(B, gb_budget, align):
    """Pick (groups_per_block, padded_group_count). Prefers >=2 blocks when
    there is enough work (v7x megacore) and block counts that divide B (no
    padding copy / wasted work)."""
    gb_budget = max(1, gb_budget)
    if B <= gb_budget:
        if B >= 16 and B >= 2 * align:
            gb2 = _round_up((B + 1) // 2, align)
            if 2 * gb2 - B <= max(align, B // 8):   # <= ~12.5% padded work
                return gb2, 2 * gb2
        return B, B
    hi = max(align, (gb_budget // align) * align)
    lo = max(align, hi // 2)
    for g in range(hi, lo - 1, -1):                 # divisor of B -> no padding
        if g % align == 0 and B % g == 0:
            return g, B
    nblocks = _cdiv(B, hi)
    gb = _round_up(_cdiv(B, nblocks), align)
    return gb, gb * nblocks


# --------------------------------------------------------------------------
# Module forward
# --------------------------------------------------------------------------
def timesformer_causal_self_attention(hidden_states, qkv_weight, qkv_bias, *,
                                      num_heads, prefer_bf16_matmul=True):
    """hidden_states: (B, S, C); qkv_weight: (3C, C); qkv_bias: (3C,) -> (B, S, C).

    Matches TimesformerCausalSelfAttention.forward (inference path).
    prefer_bf16_matmul=True casts f32 operands to bf16 for the MXU (f32
    accumulation kept) and keeps the qkv intermediate in bf16.
    TODO(synk): attention dropout p>0 (training), output_attentions=True
    (returning probs) and the LoRA branch are not materialized in the kernels.
    """
    B, S, C = hidden_states.shape
    H = num_heads
    assert C % H == 0, "hidden_size must be divisible by num_heads"
    assert qkv_weight.shape == (3 * C, C) and qkv_bias.shape == (3 * C,)
    d = C // H
    SH = S * H
    scale = float(d) ** -0.5
    in_dtype = hidden_states.dtype

    if prefer_bf16_matmul and jnp.dtype(in_dtype) == jnp.float32:
        compute_dtype = jnp.bfloat16        # bf16 operands + f32 accumulate
    else:
        compute_dtype = in_dtype

    # One-time weight prep (HBM): transpose to (K, N) so the kernel never
    # contracts against the weight's lane dim; bias kept in f32.
    w_t = qkv_weight.T.astype(compute_dtype)
    bias_f32 = qkv_bias.astype(jnp.float32).reshape(1, 3 * C)

    # Shared group blocking for both kernels (projection M tile == gb * S).
    qkv_bpe = jnp.dtype(compute_dtype).itemsize
    out_bpe = jnp.dtype(in_dtype).itemsize
    gb_attn = _attention_group_budget(S, H, d, qkv_bpe, out_bpe)
    gb_proj = max(1, 512 // S) if S < 512 else 1    # keep M tile <= ~512 rows
    align = 8 // math.gcd(S, 8)                     # so gb*S is sublane aligned
    gb, Bp = _choose_group_block(B, min(gb_attn, gb_proj), align)

    M, Mp = B * S, Bp * S
    x2d = hidden_states.reshape(M, C).astype(compute_dtype)
    if Mp > M:
        x2d = jnp.pad(x2d, ((0, Mp - M), (0, 0)))   # zero rows, sliced at the end

    # 1) fused QKV projection (dominant op).
    qkv2d = _qkv_projection(x2d, w_t, bias_f32, tm=gb * S, out_dtype=compute_dtype)

    # 2) metadata-only view (no HBM transpose): 3C columns are (proj, head, d).
    qkv5 = qkv2d.reshape(Bp, S, 3, H, d)

    # Combined same-head & causal additive mask over the folded (s, h) row axis.
    idx = jnp.arange(SH)
    keep = ((idx[:, None] % H) == (idx[None, :] % H)) & \
           ((idx[None, :] // H) <= (idx[:, None] // H))
    attn_mask = jnp.where(keep, 0.0, -1e30).astype(jnp.float32)

    # 3) causal attention; output already in merged-head (B, S*H, d) layout.
    ctx = _causal_attention(qkv5, attn_mask, gb=gb, scale=scale, out_dtype=in_dtype)

    out = ctx.reshape(Bp, S, C)                     # metadata-only reshape
    return out[:B] if Bp > B else out


if __name__ == "__main__":
    def ref_fn(x, w, b, num_heads):
        # Pure-JAX reproduction of the PyTorch forward (f32).
        Bb, Ss, Cc = x.shape
        dd = Cc // num_heads
        x32, w32, b32 = (a.astype(jnp.float32) for a in (x, w, b))
        qkv = (x32 @ w32.T + b32).reshape(Bb, Ss, 3, num_heads, dd)
        qkv = qkv.transpose(2, 0, 3, 1, 4)
        q, k, v = qkv[0], qkv[1], qkv[2]
        s = jnp.einsum("bhqd,bhkd->bhqk", q, k) * (dd ** -0.5)
        mask = jnp.tril(jnp.ones((Ss, Ss), dtype=bool))
        s = jnp.where(mask, s, -jnp.inf)
        p = jax.nn.softmax(s, axis=-1)
        ctx = jnp.einsum("bhqk,bhkd->bhqd", p, v)
        return ctx.transpose(0, 2, 1, 3).reshape(Bb, Ss, Cc)

    key = jax.random.PRNGKey(0)

    # Config 1: small shapes consistent with the module (batch, num_frames,
    # hidden_size, num_heads) = (2, 8, 32, 4).
    batch, frames, hidden, heads = 2, 8, 32, 4
    k1, k2, k3, key = jax.random.split(key, 4)
    x = jax.random.normal(k1, (batch, frames, hidden), dtype=jnp.float32)
    w = 0.02 * jax.random.normal(k2, (3 * hidden, hidden), dtype=jnp.float32)
    b = 0.02 * jax.random.normal(k3, (3 * hidden,), dtype=jnp.float32)
    ref = ref_fn(x, w, b, heads)

    # Strict f32 path (f32 MXU operands, tight tolerance; approx reciprocal in
    # the softmax is the only approximate step).
    fwd_f32 = jax.jit(functools.partial(timesformer_causal_self_attention,
                                        num_heads=heads, prefer_bf16_matmul=False))
    out = jax.block_until_ready(fwd_f32(x, w, b))
    assert out.shape == (batch, frames, hidden)
    err = float(jnp.max(jnp.abs(out - ref)))
    assert err < 2e-3, f"f32 path error {err}"

    # Default perf path: f32 inputs, bf16 MXU operands + f32 accumulate.
    fwd_fast = jax.jit(functools.partial(timesformer_causal_self_attention,
                                         num_heads=heads, prefer_bf16_matmul=True))
    out_fast = jax.block_until_ready(fwd_fast(x, w, b))
    err = float(jnp.max(jnp.abs(out_fast - ref)))
    assert err < 3e-2, f"bf16-operand path error {err}"

    # End-to-end bf16 inputs (v5e bandwidth recipe).
    out_bf16 = jax.block_until_ready(
        fwd_fast(x.astype(jnp.bfloat16), w.astype(jnp.bfloat16),
                 b.astype(jnp.bfloat16)))
    err = float(jnp.max(jnp.abs(out_bf16.astype(jnp.float32) - ref)))
    assert err < 5e-2, f"bf16-input path error {err}"

    # Config 2: exercises the multi-block grid + group padding path
    # (19 groups -> 2 blocks of 10, last block partially padded with zeros).
    batch2, frames2, hidden2, heads2 = 19, 8, 64, 4
    k1, k2, k3, key = jax.random.split(key, 4)
    x2 = jax.random.normal(k1, (batch2, frames2, hidden2), dtype=jnp.float32)
    w2 = 0.02 * jax.random.normal(k2, (3 * hidden2, hidden2), dtype=jnp.float32)
    b2 = 0.02 * jax.random.normal(k3, (3 * hidden2,), dtype=jnp.float32)
    ref2 = ref_fn(x2, w2, b2, heads2)
    fwd2 = jax.jit(functools.partial(timesformer_causal_self_attention,
                                     num_heads=heads2, prefer_bf16_matmul=False))
    out2 = jax.block_until_ready(fwd2(x2, w2, b2))
    assert out2.shape == (batch2, frames2, hidden2)
    err = float(jnp.max(jnp.abs(out2 - ref2)))
    assert err < 2e-3, f"multi-block path error {err}"

    print("KERNEL_OK")
</pallas_src>

<mosaic_0001>
module attributes {stable_mosaic.version = 11 : i64} {
  func.func @_qkv_proj_kernel(%arg0: i32, %arg1: i32, %arg2: memref<16x32xf32, #tpu.memory_space<vmem>>, %arg3: memref<32x96xf32, #tpu.memory_space<vmem>>, %arg4: memref<1x96xf32, #tpu.memory_space<vmem>>, %arg5: memref<16x96xf32, #tpu.memory_space<vmem>>) attributes {dimension_semantics = [#tpu.dimension_semantics<parallel>, #tpu.dimension_semantics<parallel>], iteration_bounds = array<i64: 1, 1>, scalar_prefetch = 0 : i64, scratch_operands = 0 : i64, tpu.core_type = #tpu.core_type<tc>, window_params = [{transform_indices = @transform_0, window_bounds = array<i64: 16, 32>}, {transform_indices = @transform_1, window_bounds = array<i64: 32, 96>}, {transform_indices = @transform_2, window_bounds = array<i64: 1, 96>}, {transform_indices = @transform_3, window_bounds = array<i64: 16, 96>}]} {
    %c0 = arith.constant 0 : index
    %c0_0 = arith.constant 0 : index
    %0 = vector.load %arg2[%c0, %c0_0] : memref<16x32xf32, #tpu.memory_space<vmem>>, vector<16x32xf32>
    %c0_1 = arith.constant 0 : index
    %c0_2 = arith.constant 0 : index
    %1 = vector.load %arg3[%c0_1, %c0_2] : memref<32x96xf32, #tpu.memory_space<vmem>>, vector<32x96xf32>
    %cst = arith.constant dense<0.000000e+00> : vector<16x96xf32>
    %2 = tpu.matmul %0, %1, %cst {dimension_numbers = #tpu.dot_dimension_numbers<[1], [0], [0], [1], [0, 0, 1, 1], [], []>} : vector<16x32xf32>, vector<32x96xf32>, vector<16x96xf32> -> vector<16x96xf32>
    %c0_3 = arith.constant 0 : index
    %c0_4 = arith.constant 0 : index
    %3 = vector.load %arg4[%c0_3, %c0_4] : memref<1x96xf32, #tpu.memory_space<vmem>>, vector<1x96xf32>
    %4 = vector.broadcast %3 : vector<1x96xf32> to vector<16x96xf32>
    %5 = arith.addf %2, %4 : vector<16x96xf32>
    %c0_5 = arith.constant 0 : index
    %c0_6 = arith.constant 0 : index
    %6 = vector.load %arg5[%c0_5, %c0_6] : memref<16x96xf32, #tpu.memory_space<vmem>>, vector<16x96xf32>
    tpu.vector_store %arg5[%c0_5, %c0_6], %5 {strides = array<i32>} : memref<16x96xf32, #tpu.memory_space<vmem>>, vector<16x96xf32>,
    return
  }
  func.func @transform_0(%arg0: i32, %arg1: i32) -> (i32, i32) {
    %c0_i32 = arith.constant 0 : i32
    %c0_i32_0 = arith.constant 0 : i32
    return %arg1, %c0_i32 : i32, i32
  }
  func.func @transform_1(%arg0: i32, %arg1: i32) -> (i32, i32) {
    %c0_i32 = arith.constant 0 : i32
    %c0_i32_0 = arith.constant 0 : i32
    return %c0_i32, %arg0 : i32, i32
  }
  func.func @transform_2(%arg0: i32, %arg1: i32) -> (i32, i32) {
    %c0_i32 = arith.constant 0 : i32
    %c0_i32_0 = arith.constant 0 : i32
    return %c0_i32, %arg0 : i32, i32
  }
  func.func @transform_3(%arg0: i32, %arg1: i32) -> (i32, i32) {
    %c0_i32 = arith.constant 0 : i32
    return %arg1, %arg0 : i32, i32
  }
}

module attributes {stable_mosaic.version = 11 : i64} {
  func.func @_attn_kernel(%arg0: i32, %arg1: memref<2x8x3x4x8xf32, #tpu.memory_space<vmem>>, %arg2: memref<32x32xf32, #tpu.memory_space<vmem>>, %arg3: memref<2x32x8xf32, #tpu.memory_space<vmem>>) attributes {dimension_semantics = [#tpu.dimension_semantics<parallel>], iteration_bounds = array<i64: 1>, scalar_prefetch = 0 : i64, scratch_operands = 0 : i64, tpu.core_type = #tpu.core_type<tc>, window_params = [{transform_indices = @transform_0, window_bounds = array<i64: 2, 8, 3, 4, 8>}, {pipeline_mode = #tpu.pipeline_mode<synchronous>, transform_indices = @transform_1, window_bounds = array<i64: 32, 32>}, {transform_indices = @transform_2, window_bounds = array<i64: 2, 32, 8>}]} {
    %c0 = arith.constant 0 : index
    %c0_0 = arith.constant 0 : index
    %c0_1 = arith.constant 0 : index
    %c0_2 = arith.constant 0 : index
    %c0_3 = arith.constant 0 : index
    %0 = vector.load %arg1[%c0, %c0_0, %c0_1, %c0_2, %c0_3] : memref<2x8x3x4x8xf32, #tpu.memory_space<vmem>>, vector<2x8x3x4x8xf32>
    %1 = vector.extract_strided_slice %0 {offsets = [0, 0, 0, 0, 0], sizes = [2, 8, 1, 4, 8], strides = [1, 1, 1, 1, 1]} : vector<2x8x3x4x8xf32> to vector<2x8x1x4x8xf32>
    %2 = vector.shape_cast %1 : vector<2x8x1x4x8xf32> to vector<2x8x4x8xf32>
    %3 = vector.shape_cast %2 : vector<2x8x4x8xf32> to vector<2x32x8xf32>
    %4 = vector.extract_strided_slice %0 {offsets = [0, 0, 1, 0, 0], sizes = [2, 8, 1, 4, 8], strides = [1, 1, 1, 1, 1]} : vector<2x8x3x4x8xf32> to vector<2x8x1x4x8xf32>
    %5 = vector.shape_cast %4 : vector<2x8x1x4x8xf32> to vector<2x8x4x8xf32>
    %6 = vector.shape_cast %5 : vector<2x8x4x8xf32> to vector<2x32x8xf32>
    %7 = vector.extract_strided_slice %0 {offsets = [0, 0, 2, 0, 0], sizes = [2, 8, 1, 4, 8], strides = [1, 1, 1, 1, 1]} : vector<2x8x3x4x8xf32> to vector<2x8x1x4x8xf32>
    %8 = vector.shape_cast %7 : vector<2x8x1x4x8xf32> to vector<2x8x4x8xf32>
    %9 = vector.shape_cast %8 : vector<2x8x4x8xf32> to vector<2x32x8xf32>
    "tpu.trace_start"() <{level = 10 : i32, message = "gmd,gnd->gmn"}> : () -> ()
    %cst = arith.constant dense<0.000000e+00> : vector<2x32x32xf32>
    %10 = tpu.matmul %3, %6, %cst {dimension_numbers = #tpu.dot_dimension_numbers<[2], [2], [1], [1], [0, 0, 0, 1, 1, 1], [0], [0]>} : vector<2x32x8xf32>, vector<2x32x8xf32>, vector<2x32x32xf32> -> vector<2x32x32xf32>
    "tpu.trace_stop"() : () -> ()
    %cst_4 = arith.constant 0.353553385 : f32
    %11 = vector.broadcast %cst_4 : f32 to vector<2x32x32xf32>
    %12 = arith.mulf %10, %11 : vector<2x32x32xf32>
    %c0_5 = arith.constant 0 : index
    %c0_6 = arith.constant 0 : index
    %13 = vector.load %arg2[%c0_5, %c0_6] : memref<32x32xf32, #tpu.memory_space<vmem>>, vector<32x32xf32>
    %14 = vector.shape_cast %13 : vector<32x32xf32> to vector<1x32x32xf32>
    %15 = vector.broadcast %14 : vector<1x32x32xf32> to vector<2x32x32xf32>
    %16 = arith.addf %12, %15 : vector<2x32x32xf32>
    %cst_7 = arith.constant dense<0xFF800000> : vector<2x32xf32>
    %17 = vector.multi_reduction <maximumf>, %16, %cst_7 [2] : vector<2x32x32xf32> to vector<2x32xf32>
    %18 = vector.shape_cast %17 : vector<2x32xf32> to vector<2x32x1xf32>
    %19 = vector.broadcast %18 : vector<2x32x1xf32> to vector<2x32x32xf32>
    %20 = arith.subf %16, %19 : vector<2x32x32xf32>
    %21 = math.exp %20 : vector<2x32x32xf32>
    %cst_8 = arith.constant dense<0.000000e+00> : vector<2x32xf32>
    %22 = vector.multi_reduction <add>, %21, %cst_8 [2] : vector<2x32x32xf32> to vector<2x32xf32>
    %23 = vector.shape_cast %22 : vector<2x32xf32> to vector<2x32x1xf32>
    %24 = tpu.reciprocal %23 {approx = true} : vector<2x32x1xf32> -> vector<2x32x1xf32>
    %25 = vector.broadcast %24 : vector<2x32x1xf32> to vector<2x32x32xf32>
    %26 = arith.mulf %21, %25 : vector<2x32x32xf32>
    "tpu.trace_start"() <{level = 10 : i32, message = "gmn,gnd->gmd"}> : () -> ()
    %cst_9 = arith.constant dense<0.000000e+00> : vector<2x32x8xf32>
    %27 = tpu.matmul %26, %9, %cst_9 {dimension_numbers = #tpu.dot_dimension_numbers<[2], [1], [1], [2], [0, 0, 0, 1, 1, 2], [0], [0]>} : vector<2x32x32xf32>, vector<2x32x8xf32>, vector<2x32x8xf32> -> vector<2x32x8xf32>
    "tpu.trace_stop"() : () -> ()
    %c0_10 = arith.constant 0 : index
    %c0_11 = arith.constant 0 : index
    %c0_12 = arith.constant 0 : index
    %28 = vector.load %arg3[%c0_10, %c0_11, %c0_12] : memref<2x32x8xf32, #tpu.memory_space<vmem>>, vector<2x32x8xf32>
    tpu.vector_store %arg3[%c0_10, %c0_11, %c0_12], %27 {strides = array<i32>} : memref<2x32x8xf32, #tpu.memory_space<vmem>>, vector<2x32x8xf32>,
    return
  }
  func.func @transform_0(%arg0: i32) -> (i32, i32, i32, i32, i32) {
    %c0_i32 = arith.constant 0 : i32
    %c0_i32_0 = arith.constant 0 : i32
    %c0_i32_1 = arith.constant 0 : i32
    %c0_i32_2 = arith.constant 0 : i32
    %c0_i32_3 = arith.constant 0 : i32
    return %arg0, %c0_i32, %c0_i32_0, %c0_i32_1, %c0_i32_2 : i32, i32, i32, i32, i32
  }
  func.func @transform_1(%arg0: i32) -> (i32, i32) {
    %c0_i32 = arith.constant 0 : i32
    %c0_i32_0 = arith.constant 0 : i32
    %c0_i32_1 = arith.constant 0 : i32
    return %c0_i32, %c0_i32_0 : i32, i32
  }
  func.func @transform_2(%arg0: i32) -> (i32, i32, i32) {
    %c0_i32 = arith.constant 0 : i32
    %c0_i32_0 = arith.constant 0 : i32
    %c0_i32_1 = arith.constant 0 : i32
    return %arg0, %c0_i32, %c0_i32_0 : i32, i32, i32
  }
}

</mosaic_0001>

<llo_original>
// kernel: timesformer_causal_self_attention.2
$region0: #{timesformer_causal_self_attention.2}
  #allocation0 [shape = 'u32[]', space=smem, size = 0x4, offset = 0x4, fixed_abs, tag = 'smem constant byte address 0x4 - core index']
  #allocation1 [shape = 'u32[144,128]{1,0:T(1,128)}', space=vmem, size = 0x12000, scoped, tag = 'internal scratch']
  %s0 = inlined_call_operand.hbm [shape: f32[16,32], index: 0, kind: input, shape index: {}]
  %s1 = inlined_call_operand.hbm [shape: f32[32,96], index: 1, kind: input, shape index: {}]
  %s2 = inlined_call_operand.vmem [shape: f32[1,96], index: 2, kind: input, shape index: {}]
  %s3 = inlined_call_operand.vmem [shape: f32[16,96], index: 3, kind: output, shape index: {}]
  %s4 = sld [smem:[#allocation0]]
  $region30: #{timesformer_causal_self_attention.2} parent=0
    _
  %s6 = ssub.s32 1, %s4
  %s7 = scalar_select 0, %s6, %s4
  $region1: #{timesformer_causal_self_attention.2} parent=0
    #allocation2 [shape = 'u8[8192]{0}', space=vmem, size = 0x2000, scoped, tag = 'input window, operand 0, single buffered']
    #allocation3 [shape = 's32[1]{0}', space=sflag, size = 0x4, scoped, tag = 'scoped memory for timesformer_causal_self_attention.2']
    #allocation4 [shape = 'u8[16384]{0}', space=vmem, size = 0x4000, scoped, tag = 'input window, operand 1, single buffered']
    #allocation5 [shape = 's32[1]{0}', space=sflag, size = 0x4, scoped, tag = 'scoped memory for timesformer_causal_self_attention.2']
    %8 = vsyncpa [#allocation3], 0
    %9 = vsyncpa [#allocation5], 0
    // Predicated region
    $region2: #{timesformer_causal_self_attention.2} parent=1 // pred_check
      _
    $region3: #{timesformer_causal_self_attention.2} parent=1 // pred_check_branch
      %11 = sbr.rel (0) target = $region5
    $region4: #{timesformer_causal_self_attention.2} parent=1 // pred_region
      %s13 = ssub.s32 256, 256
      %14 = vsyncadd [#allocation3], %s13
      %s15 = sshll.u32 [#allocation2], 4
      %s16 = int_to_ptr.vmem [resolvable:$true] %s15
      %21 = dma.hbm_to_vmem [thread:$0]  %s0, 256, %s16, [#allocation3], 128, 128, 8
    $region5: #{timesformer_causal_self_attention.2} parent=1 // pred_fallthru
      _
    // Predicated region
    $region6: #{timesformer_causal_self_attention.2} parent=1 // pred_check
      _
    $region7: #{timesformer_causal_self_attention.2} parent=1 // pred_check_branch
      %23 = sbr.rel (0) target = $region9
    $region8: #{timesformer_causal_self_attention.2} parent=1 // pred_region
      %s25 = ssub.s32 512, 512
      %26 = vsyncadd [#allocation5], %s25
      %s27 = sshll.u32 [#allocation4], 4
      %s28 = int_to_ptr.vmem [resolvable:$true] %s27
      %33 = dma.hbm_to_vmem [thread:$0]  %s1, 512, %s28, [#allocation5], 128, 128, 8
    $region9: #{timesformer_causal_self_attention.2} parent=1 // pred_fallthru
      _
    // Predicated region
    $region10: #{timesformer_causal_self_attention.2} parent=1 // pred_check
      _
    $region11: #{timesformer_causal_self_attention.2} parent=1 // pred_check_branch
      %35 = sbr.rel (0) target = $region13
    $region12: #{timesformer_causal_self_attention.2} parent=1 // pred_region
      _
    $region13: #{timesformer_causal_self_attention.2} parent=1 // pred_fallthru
      _
    // Predicated region
    $region14: #{timesformer_causal_self_attention.2} parent=1 // pred_check
      _
    $region15: #{timesformer_causal_self_attention.2} parent=1 // pred_check_branch
      %37 = sbr.rel (0) target = $region17
    $region16: #{timesformer_causal_self_attention.2} parent=1 // pred_region
      %38 = dma.done [#allocation3], 256
    $region17: #{timesformer_causal_self_attention.2} parent=1 // pred_fallthru
      _
    // Predicated region
    $region18: #{timesformer_causal_self_attention.2} parent=1 // pred_check
      _
    $region19: #{timesformer_causal_self_attention.2} parent=1 // pred_check_branch
      %40 = sbr.rel (0) target = $region21
    $region20: #{timesformer_causal_self_attention.2} parent=1 // pred_region
      %41 = dma.done [#allocation5], 512
    $region21: #{timesformer_causal_self_attention.2} parent=1 // pred_fallthru
      _
    %v42 = vld [vmem:[#allocation2] sm:$0xff]
    %v43 = vld [vmem:[#allocation2 + $0x8] sm:$0xff]
    %v44 = vld [vmem:[#allocation4] sm:$0xff]
    %v45 = vld [vmem:[#allocation4 + $0x8] sm:$0xff]
    %v46 = vld [vmem:[#allocation4 + $0x10] sm:$0xff]
    %v47 = vld [vmem:[#allocation4 + $0x18] sm:$0xff]
    %v48 = vld [vmem:[%s2] sm:$0x1]
    %v50 = vlaneseq
    %v51 = vshrl.u32 %v50, 7
    %v52 = vsub.s32 0, %v51
    %v53 = vrot.slane %v48, %v52
    %vm55 = vcmask 261120
    %v57 = vsel %vm55, %v42, 0
    %v60 = vsel %vm55, %v43, 0
    %62 = vmatprep.subr.mxu0 0.0
    %63 = vmatpush1.msra.mxu0 0.0
    %64 = vmatprep.subr.mxu0 0.0
    %65 = vmatpush1.msra.mxu0 0.0
    %66 = vmatprep.subr.mxu0 0.0
    %67 = vmatpush1.msra.mxu0 0.0
    %68 = vmatprep.subr.mxu0 0.0
    %69 = vmatpush1.msra.mxu0 0.0
    %70 = vmatprep.subr.mxu0 0.0
    %71 = vmatpush1.msra.mxu0 0.0
    %72 = vmatprep.subr.mxu0 0.0
    %73 = vmatpush1.msra.mxu0 0.0
    %74 = vmatprep.subr.mxu0 0.0
    %75 = vmatpush1.msra.mxu0 0.0
    %76 = vmatprep.subr.mxu0 0.0
    %77 = vmatpush1.msra.mxu0 0.0
    %78 = vmatprep.subr.mxu0 0.0
    %79 = vmatpush1.msra.mxu0 0.0
    %80 = vmatprep.subr.mxu0 0.0
    %81 = vmatpush1.msra.mxu0 0.0
    %82 = vmatprep.subr.mxu0 0.0
    %83 = vmatpush1.msra.mxu0 0.0
    %84 = vmatprep.subr.mxu0 0.0
    %85 = vmatpush1.msra.mxu0 0.0
    %86 = vmatprep.subr.mxu0 0.0
    %87 = vmatpush1.msra.mxu0 %v47
    %88 = vmatprep.subr.mxu0 0.0
    %89 = vmatpush1.msra.mxu0 %v46
    %90 = vmatprep.subr.mxu0 0.0
    %91 = vmatpush1.msra.mxu0 %v45
    %92 = vmatprep.subr.mxu0 0.0
    %93 = vmatpush1.msra.mxu0 %v44
    %94 = vmatprep.subr.mxu0 0.0
    %95 = vmatpush2.msra.mxu0 0.0
    %96 = vmatprep.subr.mxu0 0.0
    %97 = vmatpush2.msra.mxu0 0.0
    %98 = vmatprep.subr.mxu0 0.0
    %99 = vmatpush2.msra.mxu0 0.0
    %100 = vmatprep.subr.mxu0 0.0
    %101 = vmatpush2.msra.mxu0 0.0
    %102 = vmatprep.subr.mxu0 0.0
    %103 = vmatpush2.msra.mxu0 0.0
    %104 = vmatprep.subr.mxu0 0.0
    %105 = vmatpush2.msra.mxu0 0.0
    %106 = vmatprep.subr.mxu0 0.0
    %107 = vmatpush2.msra.mxu0 0.0
    %108 = vmatprep.subr.mxu0 0.0
    %109 = vmatpush2.msra.mxu0 0.0
    %110 = vmatprep.subr.mxu0 0.0
    %111 = vmatpush2.msra.mxu0 0.0
    %112 = vmatprep.subr.mxu0 0.0
    %113 = vmatpush2.msra.mxu0 0.0
    %114 = vmatprep.subr.mxu0 0.0
    %115 = vmatpush2.msra.mxu0 0.0
    %116 = vmatprep.subr.mxu0 0.0
    %117 = vmatpush2.msra.mxu0 0.0
    %118 = vmatprep.subr.mxu0 0.0
    %119 = vmatpush2.msra.mxu0 0.0
    %120 = vmatprep.subr.mxu0 0.0
    %121 = vmatpush2.msra.mxu0 0.0
    %122 = vmatprep.subr.mxu0 0.0
    %123 = vmatpush2.msra.mxu0 0.0
    %124 = vmatprep.subr.mxu0 0.0
    %125 = vmatpush2.msra.mxu0 0.0
    %126 = vmatprep.mubr.f32.mxu0 0.0
    %127 = vmatmul.mubr.f32.gmra.mxu0 %v57
    %v128 = vpop.f32.mrf.mxu0
    %v129 = vadd.f32 %v53, %v128
    %v130 = vpop.f32.mrf.mxu0
    %131 = vmatprep.mubr.f32.mxu0 0.0
    %132 = vmatmul.mubr.f32.gmra.mxu0 %v60
    %v133 = vpop.f32.mrf.mxu0
    %v134 = vadd.f32 %v53, %v133
    %v135 = vpop.f32.mrf.mxu0
    %136 = vdwg.mxu0
    %vm137 = vcmask 785408
    %138 = vst.msk [vmem:[%s3] sm:$0xff] %vm137, %v129
    %139 = vst.msk [vmem:[%s3 + $0x8] sm:$0xff] %vm137, %v134
    // Predicated region
    $region22: #{timesformer_causal_self_attention.2} parent=1 // pred_check
      _
    $region23: #{timesformer_causal_self_attention.2} parent=1 // pred_check_branch
      %141 = sbr.rel (0) target = $region25
    $region24: #{timesformer_causal_self_attention.2} parent=1 // pred_region
      _
    $region25: #{timesformer_causal_self_attention.2} parent=1 // pred_fallthru
      _
    // Predicated region
    $region26: #{timesformer_causal_self_attention.2} parent=1 // pred_check
      _
    $region27: #{timesformer_causal_self_attention.2} parent=1 // pred_check_branch
      %143 = sbr.rel (0) target = $region29
    $region28: #{timesformer_causal_self_attention.2} parent=1 // pred_region
      _
    $region29: #{timesformer_causal_self_attention.2} parent=1 // pred_fallthru
      _
    %144 = vsyncpa [#allocation3], 1
    %145 = vsyncpa [#allocation5], 1

// kernel: timesformer_causal_self_attention.3
$region0: #{timesformer_causal_self_attention.3}
  #allocation0 [shape = 'u32[]', space=smem, size = 0x4, offset = 0x4, fixed_abs, tag = 'smem constant byte address 0x4 - core index']
  #allocation1 [shape = 'u32[144,128]{1,0:T(1,128)}', space=vmem, size = 0x12000, scoped, tag = 'internal scratch']
  %s0 = inlined_call_operand.vmem [shape: f32[2,8,3,4,8], index: 0, kind: input, shape index: {}]
  %s1 = inlined_call_operand.vmem [shape: f32[32,32], index: 1, kind: input, shape index: {}]
  %s2 = inlined_call_operand.vmem [shape: f32[2,32,8], index: 2, kind: output, shape index: {}]
  %s3 = sld [smem:[#allocation0]]
  $region18: #{timesformer_causal_self_attention.3} parent=0
    _
  %s5 = ssub.s32 1, %s3
  %s6 = scalar_select 0, %s5, %s3
  // Predicated region
  $region2: #{timesformer_causal_self_attention.3} parent=0 // pred_check
    _
  $region3: #{timesformer_causal_self_attention.3} parent=0 // pred_check_branch
    %8 = sbr.rel (0) target = $region5
  $region4: #{timesformer_causal_self_attention.3} parent=0 // pred_region
    _
  $region5: #{timesformer_causal_self_attention.3} parent=0 // pred_fallthru
    _
  // Predicated region
  $region6: #{timesformer_causal_self_attention.3} parent=0 // pred_check
    _
  $region7: #{timesformer_causal_self_attention.3} parent=0 // pred_check_branch
    %10 = sbr.rel (0) target = $region9
  $region8: #{timesformer_causal_self_attention.3} parent=0 // pred_region
    _
  $region9: #{timesformer_causal_self_attention.3} parent=0 // pred_fallthru
    _
  %v11 = vld [vmem:[%s0] sm:$0xf]
  %v12 = vld [vmem:[%s0 + $0x4] sm:$0xf]
  %v13 = vld [vmem:[%s0 + $0x8] sm:$0xf]
  %v14 = vld [vmem:[%s0 + $0xc] sm:$0xf]
  %v15 = vld [vmem:[%s0 + $0x10] sm:$0xf]
  %v16 = vld [vmem:[%s0 + $0x14] sm:$0xf]
  %v17 = vld [vmem:[%s0 + $0x18] sm:$0xf]
  %v18 = vld [vmem:[%s0 + $0x1c] sm:$0xf]
  %v19 = vld [vmem:[%s0 + $0x20] sm:$0xf]
  %v20 = vld [vmem:[%s0 + $0x24] sm:$0xf]
  %v21 = vld [vmem:[%s0 + $0x28] sm:$0xf]
  %v22 = vld [vmem:[%s0 + $0x2c] sm:$0xf]
  %v23 = vld [vmem:[%s0 + $0x30] sm:$0xf]
  %v24 = vld [vmem:[%s0 + $0x34] sm:$0xf]
  %v25 = vld [vmem:[%s0 + $0x38] sm:$0xf]
  %v26 = vld [vmem:[%s0 + $0x3c] sm:$0xf]
  %v27 = vld [vmem:[%s0 + $0x40] sm:$0xf]
  %v28 = vld [vmem:[%s0 + $0x44] sm:$0xf]
  %v29 = vld [vmem:[%s0 + $0x48] sm:$0xf]
  %v30 = vld [vmem:[%s0 + $0x4c] sm:$0xf]
  %v31 = vld [vmem:[%s0 + $0x50] sm:$0xf]
  %v32 = vld [vmem:[%s0 + $0x54] sm:$0xf]
  %v33 = vld [vmem:[%s0 + $0x58] sm:$0xf]
  %v34 = vld [vmem:[%s0 + $0x5c] sm:$0xf]
  %v35 = vld [vmem:[%s0 + $0x60] sm:$0xf]
  %v36 = vld [vmem:[%s0 + $0x64] sm:$0xf]
  %v37 = vld [vmem:[%s0 + $0x68] sm:$0xf]
  %v38 = vld [vmem:[%s0 + $0x6c] sm:$0xf]
  %v39 = vld [vmem:[%s0 + $0x70] sm:$0xf]
  %v40 = vld [vmem:[%s0 + $0x74] sm:$0xf]
  %v41 = vld [vmem:[%s0 + $0x78] sm:$0xf]
  %v42 = vld [vmem:[%s0 + $0x7c] sm:$0xf]
  %v43 = vld [vmem:[%s0 + $0x80] sm:$0xf]
  %v44 = vld [vmem:[%s0 + $0x84] sm:$0xf]
  %v45 = vld [vmem:[%s0 + $0x88] sm:$0xf]
  %v46 = vld [vmem:[%s0 + $0x8c] sm:$0xf]
  %v47 = vld [vmem:[%s0 + $0x90] sm:$0xf]
  %v48 = vld [vmem:[%s0 + $0x94] sm:$0xf]
  %v49 = vld [vmem:[%s0 + $0x98] sm:$0xf]
  %v50 = vld [vmem:[%s0 + $0x9c] sm:$0xf]
  %v51 = vld [vmem:[%s0 + $0xa0] sm:$0xf]
  %v52 = vld [vmem:[%s0 + $0xa4] sm:$0xf]
  %v53 = vld [vmem:[%s0 + $0xa8] sm:$0xf]
  %v54 = vld [vmem:[%s0 + $0xac] sm:$0xf]
  %v55 = vld [vmem:[%s0 + $0xb0] sm:$0xf]
  %v56 = vld [vmem:[%s0 + $0xb4] sm:$0xf]
  %v57 = vld [vmem:[%s0 + $0xb8] sm:$0xf]
  %v58 = vld [vmem:[%s0 + $0xbc] sm:$0xf]
  %v67 = vcombine.low %v11, %v14
  %v68 = vcombine.low %v17, %v20
  %v69 = vcombine.low %v23, %v26
  %v70 = vcombine.low %v29, %v32
  %v79 = vcombine.low %v12, %v15
  %v80 = vcombine.low %v18, %v21
  %v81 = vcombine.low %v24, %v27
  %v82 = vcombine.low %v30, %v33
  %vm83 = vcmask 64512
  %v84 = vsel %vm83, %v67, 0
  %v86 = vsel %vm83, %v68, 0
  %v88 = vsel %vm83, %v69, 0
  %v90 = vsel %vm83, %v70, 0
  %v92 = vsel %vm83, %v79, 0
  %v94 = vsel %vm83, %v80, 0
  %v96 = vsel %vm83, %v81, 0
  %v98 = vsel %vm83, %v82, 0
  %100 = vmatprep.subr.mxu0 0.0
  %101 = vmatpush1.xpose.msra.mxu0 0.0
  %102 = vmatprep.subr.mxu0 0.0
  %103 = vmatpush1.xpose.msra.mxu0 0.0
  %104 = vmatprep.subr.mxu0 0.0
  %105 = vmatpush1.xpose.msra.mxu0 0.0
  %106 = vmatprep.subr.mxu0 0.0
  %107 = vmatpush1.xpose.msra.mxu0 0.0
  %108 = vmatprep.subr.mxu0 0.0
  %109 = vmatpush1.xpose.msra.mxu0 0.0
  %110 = vmatprep.subr.mxu0 0.0
  %111 = vmatpush1.xpose.msra.mxu0 0.0
  %112 = vmatprep.subr.mxu0 0.0
  %113 = vmatpush1.xpose.msra.mxu0 0.0
  %114 = vmatprep.subr.mxu0 0.0
  %115 = vmatpush1.xpose.msra.mxu0 0.0
  %116 = vmatprep.subr.mxu0 0.0
  %117 = vmatpush1.xpose.msra.mxu0 0.0
  %118 = vmatprep.subr.mxu0 0.0
  %119 = vmatpush1.xpose.msra.mxu0 0.0
  %120 = vmatprep.subr.mxu0 0.0
  %121 = vmatpush1.xpose.msra.mxu0 0.0
  %122 = vmatprep.subr.mxu0 0.0
  %123 = vmatpush1.xpose.msra.mxu0 0.0
  %124 = vmatprep.subr.mxu0 0.0
  %125 = vmatpush1.xpose.msra.mxu0 %v98
  %126 = vmatprep.subr.mxu0 0.0
  %127 = vmatpush1.xpose.msra.mxu0 %v96
  %128 = vmatprep.subr.mxu0 0.0
  %129 = vmatpush1.xpose.msra.mxu0 %v94
  %130 = vmatprep.subr.mxu0 0.0
  %131 = vmatpush1.xpose.msra.mxu0 %v92
  %132 = vmatprep.subr.mxu0 0.0
  %133 = vmatpush2.xpose.msra.mxu0 0.0
  %134 = vmatprep.subr.mxu0 0.0
  %135 = vmatpush2.xpose.msra.mxu0 0.0
  %136 = vmatprep.subr.mxu0 0.0
  %137 = vmatpush2.xpose.msra.mxu0 0.0
  %138 = vmatprep.subr.mxu0 0.0
  %139 = vmatpush2.xpose.msra.mxu0 0.0
  %140 = vmatprep.subr.mxu0 0.0
  %141 = vmatpush2.xpose.msra.mxu0 0.0
  %142 = vmatprep.subr.mxu0 0.0
  %143 = vmatpush2.xpose.msra.mxu0 0.0
  %144 = vmatprep.subr.mxu0 0.0
  %145 = vmatpush2.xpose.msra.mxu0 0.0
  %146 = vmatprep.subr.mxu0 0.0
  %147 = vmatpush2.xpose.msra.mxu0 0.0
  %148 = vmatprep.subr.mxu0 0.0
  %149 = vmatpush2.xpose.msra.mxu0 0.0
  %150 = vmatprep.subr.mxu0 0.0
  %151 = vmatpush2.xpose.msra.mxu0 0.0
  %152 = vmatprep.subr.mxu0 0.0
  %153 = vmatpush2.xpose.msra.mxu0 0.0
  %154 = vmatprep.subr.mxu0 0.0
  %155 = vmatpush2.xpose.msra.mxu0 0.0
  %156 = vmatprep.subr.mxu0 0.0
  %157 = vmatpush2.xpose.msra.mxu0 0.0
  %158 = vmatprep.subr.mxu0 0.0
  %159 = vmatpush2.xpose.msra.mxu0 0.0
  %160 = vmatprep.subr.mxu0 0.0
  %161 = vmatpush2.xpose.msra.mxu0 0.0
  %162 = vmatprep.subr.mxu0 0.0
  %163 = vmatpush2.xpose.msra.mxu0 0.0
  %164 = vmatprep.mubr.f32.mxu0 0.0
  %165 = vmatmul.mubr.f32.gmra.mxu0 %v84
  %v166 = vpop.f32.mrf.mxu0
  %v167 = vadd.f32 0.0, %v166
  %v168 = vpop.f32.mrf.mxu0
  %169 = vmatprep.mubr.f32.mxu0 0.0
  %170 = vmatmul.mubr.f32.gmra.mxu0 %v86
  %v171 = vpop.f32.mrf.mxu0
  %v172 = vadd.f32 0.0, %v171
  %v173 = vpop.f32.mrf.mxu0
  %174 = vmatprep.mubr.f32.mxu0 0.0
  %175 = vmatmul.mubr.f32.gmra.mxu0 %v88
  %v176 = vpop.f32.mrf.mxu0
  %v177 = vadd.f32 0.0, %v176
  %v178 = vpop.f32.mrf.mxu0
  %179 = vmatprep.mubr.f32.mxu0 0.0
  %180 = vmatmul.mubr.f32.gmra.mxu0 %v90
  %v181 = vpop.f32.mrf.mxu0
  %v182 = vadd.f32 0.0, %v181
  %v183 = vpop.f32.mrf.mxu0
  %184 = vdwg.mxu0
  %v193 = vcombine.low %v35, %v38
  %v194 = vcombine.low %v41, %v44
  %v195 = vcombine.low %v47, %v50
  %v196 = vcombine.low %v53, %v56
  %v205 = vcombine.low %v36, %v39
  %v206 = vcombine.low %v42, %v45
  %v207 = vcombine.low %v48, %v51
  %v208 = vcombine.low %v54, %v57
  %v209 = vsel %vm83, %v193, 0
  %v211 = vsel %vm83, %v194, 0
  %v213 = vsel %vm83, %v195, 0
  %v215 = vsel %vm83, %v196, 0
  %v217 = vsel %vm83, %v205, 0
  %v219 = vsel %vm83, %v206, 0
  %v221 = vsel %vm83, %v207, 0
  %v223 = vsel %vm83, %v208, 0
  %225 = vmatprep.subr.mxu0 0.0
  %226 = vmatpush1.xpose.msra.mxu0 0.0
  %227 = vmatprep.subr.mxu0 0.0
  %228 = vmatpush1.xpose.msra.mxu0 0.0
  %229 = vmatprep.subr.mxu0 0.0
  %230 = vmatpush1.xpose.msra.mxu0 0.0
  %231 = vmatprep.subr.mxu0 0.0
  %232 = vmatpush1.xpose.msra.mxu0 0.0
  %233 = vmatprep.subr.mxu0 0.0
  %234 = vmatpush1.xpose.msra.mxu0 0.0
  %235 = vmatprep.subr.mxu0 0.0
  %236 = vmatpush1.xpose.msra.mxu0 0.0
  %237 = vmatprep.subr.mxu0 0.0
  %238 = vmatpush1.xpose.msra.mxu0 0.0
  %239 = vmatprep.subr.mxu0 0.0
  %240 = vmatpush1.xpose.msra.mxu0 0.0
  %241 = vmatprep.subr.mxu0 0.0
  %242 = vmatpush1.xpose.msra.mxu0 0.0
  %243 = vmatprep.subr.mxu0 0.0
  %244 = vmatpush1.xpose.msra.mxu0 0.0
  %245 = vmatprep.subr.mxu0 0.0
  %246 = vmatpush1.xpose.msra.mxu0 0.0
  %247 = vmatprep.subr.mxu0 0.0
  %248 = vmatpush1.xpose.msra.mxu0 0.0
  %249 = vmatprep.subr.mxu0 0.0
  %250 = vmatpush1.xpose.msra.mxu0 %v223
  %251 = vmatprep.subr.mxu0 0.0
  %252 = vmatpush1.xpose.msra.mxu0 %v221
  %253 = vmatprep.subr.mxu0 0.0
  %254 = vmatpush1.xpose.msra.mxu0 %v219
  %255 = vmatprep.subr.mxu0 0.0
  %256 = vmatpush1.xpose.msra.mxu0 %v217
  %257 = vmatprep.subr.mxu0 0.0
  %258 = vmatpush2.xpose.msra.mxu0 0.0
  %259 = vmatprep.subr.mxu0 0.0
  %260 = vmatpush2.xpose.msra.mxu0 0.0
  %261 = vmatprep.subr.mxu0 0.0
  %262 = vmatpush2.xpose.msra.mxu0 0.0
  %263 = vmatprep.subr.mxu0 0.0
  %264 = vmatpush2.xpose.msra.mxu0 0.0
  %265 = vmatprep.subr.mxu0 0.0
  %266 = vmatpush2.xpose.msra.mxu0 0.0
  %267 = vmatprep.subr.mxu0 0.0
  %268 = vmatpush2.xpose.msra.mxu0 0.0
  %269 = vmatprep.subr.mxu0 0.0
  %270 = vmatpush2.xpose.msra.mxu0 0.0
  %271 = vmatprep.subr.mxu0 0.0
  %272 = vmatpush2.xpose.msra.mxu0 0.0
  %273 = vmatprep.subr.mxu0 0.0
  %274 = vmatpush2.xpose.msra.mxu0 0.0
  %275 = vmatprep.subr.mxu0 0.0
  %276 = vmatpush2.xpose.msra.mxu0 0.0
  %277 = vmatprep.subr.mxu0 0.0
  %278 = vmatpush2.xpose.msra.mxu0 0.0
  %279 = vmatprep.subr.mxu0 0.0
  %280 = vmatpush2.xpose.msra.mxu0 0.0
  %281 = vmatprep.subr.mxu0 0.0
  %282 = vmatpush2.xpose.msra.mxu0 0.0
  %283 = vmatprep.subr.mxu0 0.0
  %284 = vmatpush2.xpose.msra.mxu0 0.0
  %285 = vmatprep.subr.mxu0 0.0
  %286 = vmatpush2.xpose.msra.mxu0 0.0
  %287 = vmatprep.subr.mxu0 0.0
  %288 = vmatpush2.xpose.msra.mxu0 0.0
  %289 = vmatprep.mubr.f32.mxu0 0.0
  %290 = vmatmul.mubr.f32.gmra.mxu0 %v209
  %v291 = vpop.f32.mrf.mxu0
  %v292 = vadd.f32 0.0, %v291
  %v293 = vpop.f32.mrf.mxu0
  %294 = vmatprep.mubr.f32.mxu0 0.0
  %295 = vmatmul.mubr.f32.gmra.mxu0 %v211
  %v296 = vpop.f32.mrf.mxu0
  %v297 = vadd.f32 0.0, %v296
  %v298 = vpop.f32.mrf.mxu0
  %299 = vmatprep.mubr.f32.mxu0 0.0
  %300 = vmatmul.mubr.f32.gmra.mxu0 %v213
  %v301 = vpop.f32.mrf.mxu0
  %v302 = vadd.f32 0.0, %v301
  %v303 = vpop.f32.mrf.mxu0
  %304 = vmatprep.mubr.f32.mxu0 0.0
  %305 = vmatmul.mubr.f32.gmra.mxu0 %v215
  %v306 = vpop.f32.mrf.mxu0
  %v307 = vadd.f32 0.0, %v306
  %v308 = vpop.f32.mrf.mxu0
  %309 = vdwg.mxu0
  %v310 = vmul.f32 %v167, 0.35355338
  %v311 = vmul.f32 %v172, 0.35355338
  %v312 = vmul.f32 %v177, 0.35355338
  %v313 = vmul.f32 %v182, 0.35355338
  %v314 = vmul.f32 %v292, 0.35355338
  %v315 = vmul.f32 %v297, 0.35355338
  %v316 = vmul.f32 %v302, 0.35355338
  %v317 = vmul.f32 %v307, 0.35355338
  %v318 = vld [vmem:[%s1] sm:$0xff]
  %v319 = vld [vmem:[%s1 + $0x8] sm:$0xff]
  %v320 = vld [vmem:[%s1 + $0x10] sm:$0xff]
  %v321 = vld [vmem:[%s1 + $0x18] sm:$0xff]
  %v322 = vadd.f32 %v310, %v318
  %v323 = vadd.f32 %v311, %v319
  %v324 = vadd.f32 %v312, %v320
  %v325 = vadd.f32 %v313, %v321
  %v326 = vadd.f32 %v314, %v318
  %v327 = vadd.f32 %v315, %v319
  %v328 = vadd.f32 %v316, %v320
  %v329 = vadd.f32 %v317, %v321
  %vm330 = vcmask 261120
  %v331 = vsel %vm330, %v322, -inf
  %332 = vmax.xlane.f32.xlu0 %v331
  %v333 = vpop.xlane.xlu0 %332
  %v334 = vsel %vm330, %v323, -inf
  %335 = vmax.xlane.f32.xlu0 %v334
  %v336 = vpop.xlane.xlu0 %335
  %v337 = vsel %vm330, %v324, -inf
  %338 = vmax.xlane.f32.xlu0 %v337
  %v339 = vpop.xlane.xlu0 %338
  %v340 = vsel %vm330, %v325, -inf
  %341 = vmax.xlane.f32.xlu0 %v340
  %v342 = vpop.xlane.xlu0 %341
  %v343 = vsel %vm330, %v326, -inf
  %344 = vmax.xlane.f32.xlu0 %v343
  %v345 = vpop.xlane.xlu0 %344
  %v346 = vsel %vm330, %v327, -inf
  %347 = vmax.xlane.f32.xlu0 %v346
  %v348 = vpop.xlane.xlu0 %347
  %v349 = vsel %vm330, %v328, -inf
  %350 = vmax.xlane.f32.xlu0 %v349
  %v351 = vpop.xlane.xlu0 %350
  %v352 = vsel %vm330, %v329, -inf
  %353 = vmax.xlane.f32.xlu0 %v352
  %v354 = vpop.xlane.xlu0 %353
  %v355 = vsub.f32 %v322, %v333
  %v356 = vsub.f32 %v323, %v336
  %v357 = vsub.f32 %v324, %v339
  %v358 = vsub.f32 %v325, %v342
  %v359 = vsub.f32 %v326, %v345
  %v360 = vsub.f32 %v327, %v348
  %v361 = vsub.f32 %v328, %v351
  %v362 = vsub.f32 %v329, %v354
  %v363 = vmul.f32 %v355, 1.442695
  %v364 = vpow.pop %v363
  %v365 = vmul.f32 %v356, 1.442695
  %v366 = vpow.pop %v365
  %v367 = vmul.f32 %v357, 1.442695
  %v368 = vpow.pop %v367
  %v369 = vmul.f32 %v358, 1.442695
  %v370 = vpow.pop %v369
  %v371 = vmul.f32 %v359, 1.442695
  %v372 = vpow.pop %v371
  %v373 = vmul.f32 %v360, 1.442695
  %v374 = vpow.pop %v373
  %v375 = vmul.f32 %v361, 1.442695
  %v376 = vpow.pop %v375
  %v377 = vmul.f32 %v362, 1.442695
  %v378 = vpow.pop %v377
  %v379 = vsel %vm330, %v364, 0.0
  %380 = vadd.xlane.f32.xlu0 %v379
  %v381 = vpop.xlane.xlu0 %380
  %v382 = vsel %vm330, %v366, 0.0
  %383 = vadd.xlane.f32.xlu0 %v382
  %v384 = vpop.xlane.xlu0 %383
  %v385 = vsel %vm330, %v368, 0.0
  %386 = vadd.xlane.f32.xlu0 %v385
  %v387 = vpop.xlane.xlu0 %386
  %v388 = vsel %vm330, %v370, 0.0
  %389 = vadd.xlane.f32.xlu0 %v388
  %v390 = vpop.xlane.xlu0 %389
  %v391 = vsel %vm330, %v372, 0.0
  %392 = vadd.xlane.f32.xlu0 %v391
  %v393 = vpop.xlane.xlu0 %392
  %v394 = vsel %vm330, %v374, 0.0
  %395 = vadd.xlane.f32.xlu0 %v394
  %v396 = vpop.xlane.xlu0 %395
  %v397 = vsel %vm330, %v376, 0.0
  %398 = vadd.xlane.f32.xlu0 %v397
  %v399 = vpop.xlane.xlu0 %398
  %v400 = vsel %vm330, %v378, 0.0
  %401 = vadd.xlane.f32.xlu0 %v400
  %v402 = vpop.xlane.xlu0 %401
  %v403 = vrcp.pop %v381
  %v404 = vrcp.pop %v384
  %v405 = vrcp.pop %v387
  %v406 = vrcp.pop %v390
  %v407 = vrcp.pop %v393
  %v408 = vrcp.pop %v396
  %v409 = vrcp.pop %v399
  %v410 = vrcp.pop %v402
  %v411 = vmul.f32 %v364, %v403
  %v412 = vmul.f32 %v366, %v404
  %v413 = vmul.f32 %v368, %v405
  %v414 = vmul.f32 %v370, %v406
  %v415 = vmul.f32 %v372, %v407
  %v416 = vmul.f32 %v374, %v408
  %v417 = vmul.f32 %v376, %v409
  %v418 = vmul.f32 %v378, %v410
  %v427 = vcombine.low %v13, %v16
  %v428 = vcombine.low %v19, %v22
  %v429 = vcombine.low %v25, %v28
  %v430 = vcombine.low %v31, %v34
  %v436 = vsel %vm330, %v411, 0
  %v439 = vsel %vm330, %v412, 0
  %v442 = vsel %vm330, %v413, 0
  %v445 = vsel %vm330, %v414, 0
  %447 = vmatprep.subr.mxu0 0.0
  %448 = vmatpush1.msra.mxu0 0.0
  %449 = vmatprep.subr.mxu0 0.0
  %450 = vmatpush1.msra.mxu0 0.0
  %451 = vmatprep.subr.mxu0 0.0
  %452 = vmatpush1.msra.mxu0 0.0
  %453 = vmatprep.subr.mxu0 0.0
  %454 = vmatpush1.msra.mxu0 0.0
  %455 = vmatprep.subr.mxu0 0.0
  %456 = vmatpush1.msra.mxu0 0.0
  %457 = vmatprep.subr.mxu0 0.0
  %458 = vmatpush1.msra.mxu0 0.0
  %459 = vmatprep.subr.mxu0 0.0
  %460 = vmatpush1.msra.mxu0 0.0
  %461 = vmatprep.subr.mxu0 0.0
  %462 = vmatpush1.msra.mxu0 0.0
  %463 = vmatprep.subr.mxu0 0.0
  %464 = vmatpush1.msra.mxu0 0.0
  %465 = vmatprep.subr.mxu0 0.0
  %466 = vmatpush1.msra.mxu0 0.0
  %467 = vmatprep.subr.mxu0 0.0
  %468 = vmatpush1.msra.mxu0 0.0
  %469 = vmatprep.subr.mxu0 0.0
  %470 = vmatpush1.msra.mxu0 0.0
  %471 = vmatprep.subr.mxu0 0.0
  %472 = vmatpush1.msra.mxu0 %v430
  %473 = vmatprep.subr.mxu0 0.0
  %474 = vmatpush1.msra.mxu0 %v429
  %475 = vmatprep.subr.mxu0 0.0
  %476 = vmatpush1.msra.mxu0 %v428
  %477 = vmatprep.subr.mxu0 0.0
  %478 = vmatpush1.msra.mxu0 %v427
  %479 = vmatprep.subr.mxu0 0.0
  %480 = vmatpush2.msra.mxu0 0.0
  %481 = vmatprep.subr.mxu0 0.0
  %482 = vmatpush2.msra.mxu0 0.0
  %483 = vmatprep.subr.mxu0 0.0
  %484 = vmatpush2.msra.mxu0 0.0
  %485 = vmatprep.subr.mxu0 0.0
  %486 = vmatpush2.msra.mxu0 0.0
  %487 = vmatprep.subr.mxu0 0.0
  %488 = vmatpush2.msra.mxu0 0.0
  %489 = vmatprep.subr.mxu0 0.0
  %490 = vmatpush2.msra.mxu0 0.0
  %491 = vmatprep.subr.mxu0 0.0
  %492 = vmatpush2.msra.mxu0 0.0
  %493 = vmatprep.subr.mxu0 0.0
  %494 = vmatpush2.msra.mxu0 0.0
  %495 = vmatprep.subr.mxu0 0.0
  %496 = vmatpush2.msra.mxu0 0.0
  %497 = vmatprep.subr.mxu0 0.0
  %498 = vmatpush2.msra.mxu0 0.0
  %499 = vmatprep.subr.mxu0 0.0
  %500 = vmatpush2.msra.mxu0 0.0
  %501 = vmatprep.subr.mxu0 0.0
  %502 = vmatpush2.msra.mxu0 0.0
  %503 = vmatprep.subr.mxu0 0.0
  %504 = vmatpush2.msra.mxu0 0.0
  %505 = vmatprep.subr.mxu0 0.0
  %506 = vmatpush2.msra.mxu0 0.0
  %507 = vmatprep.subr.mxu0 0.0
  %508 = vmatpush2.msra.mxu0 0.0
  %509 = vmatprep.subr.mxu0 0.0
  %510 = vmatpush2.msra.mxu0 0.0
  %511 = vmatprep.mubr.f32.mxu0 0.0
  %512 = vmatmul.mubr.f32.gmra.mxu0 %v436
  %v513 = vpop.f32.mrf.mxu0
  %v514 = vadd.f32 0.0, %v513
  %v515 = vpop.f32.mrf.mxu0
  %516 = vmatprep.mubr.f32.mxu0 0.0
  %517 = vmatmul.mubr.f32.gmra.mxu0 %v439
  %v518 = vpop.f32.mrf.mxu0
  %v519 = vadd.f32 0.0, %v518
  %v520 = vpop.f32.mrf.mxu0
  %521 = vmatprep.mubr.f32.mxu0 0.0
  %522 = vmatmul.mubr.f32.gmra.mxu0 %v442
  %v523 = vpop.f32.mrf.mxu0
  %v524 = vadd.f32 0.0, %v523
  %v525 = vpop.f32.mrf.mxu0
  %526 = vmatprep.mubr.f32.mxu0 0.0
  %527 = vmatmul.mubr.f32.gmra.mxu0 %v445
  %v528 = vpop.f32.mrf.mxu0
  %v529 = vadd.f32 0.0, %v528
  %v530 = vpop.f32.mrf.mxu0
  %531 = vdwg.mxu0
  %v540 = vcombine.low %v37, %v40
  %v541 = vcombine.low %v43, %v46
  %v542 = vcombine.low %v49, %v52
  %v543 = vcombine.low %v55, %v58
  %v549 = vsel %vm330, %v415, 0
  %v552 = vsel %vm330, %v416, 0
  %v555 = vsel %vm330, %v417, 0
  %v558 = vsel %vm330, %v418, 0
  %560 = vmatprep.subr.mxu0 0.0
  %561 = vmatpush1.msra.mxu0 0.0
  %562 = vmatprep.subr.mxu0 0.0
  %563 = vmatpush1.msra.mxu0 0.0
  %564 = vmatprep.subr.mxu0 0.0
  %565 = vmatpush1.msra.mxu0 0.0
  %566 = vmatprep.subr.mxu0 0.0
  %567 = vmatpush1.msra.mxu0 0.0
  %568 = vmatprep.subr.mxu0 0.0
  %569 = vmatpush1.msra.mxu0 0.0
  %570 = vmatprep.subr.mxu0 0.0
  %571 = vmatpush1.msra.mxu0 0.0
  %572 = vmatprep.subr.mxu0 0.0
  %573 = vmatpush1.msra.mxu0 0.0
  %574 = vmatprep.subr.mxu0 0.0
  %575 = vmatpush1.msra.mxu0 0.0
  %576 = vmatprep.subr.mxu0 0.0
  %577 = vmatpush1.msra.mxu0 0.0
  %578 = vmatprep.subr.mxu0 0.0
  %579 = vmatpush1.msra.mxu0 0.0
  %580 = vmatprep.subr.mxu0 0.0
  %581 = vmatpush1.msra.mxu0 0.0
  %582 = vmatprep.subr.mxu0 0.0
  %583 = vmatpush1.msra.mxu0 0.0
  %584 = vmatprep.subr.mxu0 0.0
  %585 = vmatpush1.msra.mxu0 %v543
  %586 = vmatprep.subr.mxu0 0.0
  %587 = vmatpush1.msra.mxu0 %v542
  %588 = vmatprep.subr.mxu0 0.0
  %589 = vmatpush1.msra.mxu0 %v541
  %590 = vmatprep.subr.mxu0 0.0
  %591 = vmatpush1.msra.mxu0 %v540
  %592 = vmatprep.subr.mxu0 0.0
  %593 = vmatpush2.msra.mxu0 0.0
  %594 = vmatprep.subr.mxu0 0.0
  %595 = vmatpush2.msra.mxu0 0.0
  %596 = vmatprep.subr.mxu0 0.0
  %597 = vmatpush2.msra.mxu0 0.0
  %598 = vmatprep.subr.mxu0 0.0
  %599 = vmatpush2.msra.mxu0 0.0
  %600 = vmatprep.subr.mxu0 0.0
  %601 = vmatpush2.msra.mxu0 0.0
  %602 = vmatprep.subr.mxu0 0.0
  %603 = vmatpush2.msra.mxu0 0.0
  %604 = vmatprep.subr.mxu0 0.0
  %605 = vmatpush2.msra.mxu0 0.0
  %606 = vmatprep.subr.mxu0 0.0
  %607 = vmatpush2.msra.mxu0 0.0
  %608 = vmatprep.subr.mxu0 0.0
  %609 = vmatpush2.msra.mxu0 0.0
  %610 = vmatprep.subr.mxu0 0.0
  %611 = vmatpush2.msra.mxu0 0.0
  %612 = vmatprep.subr.mxu0 0.0
  %613 = vmatpush2.msra.mxu0 0.0
  %614 = vmatprep.subr.mxu0 0.0
  %615 = vmatpush2.msra.mxu0 0.0
  %616 = vmatprep.subr.mxu0 0.0
  %617 = vmatpush2.msra.mxu0 0.0
  %618 = vmatprep.subr.mxu0 0.0
  %619 = vmatpush2.msra.mxu0 0.0
  %620 = vmatprep.subr.mxu0 0.0
  %621 = vmatpush2.msra.mxu0 0.0
  %622 = vmatprep.subr.mxu0 0.0
  %623 = vmatpush2.msra.mxu0 0.0
  %624 = vmatprep.mubr.f32.mxu0 0.0
  %625 = vmatmul.mubr.f32.gmra.mxu0 %v549
  %v626 = vpop.f32.mrf.mxu0
  %v627 = vadd.f32 0.0, %v626
  %v628 = vpop.f32.mrf.mxu0
  %629 = vmatprep.mubr.f32.mxu0 0.0
  %630 = vmatmul.mubr.f32.gmra.mxu0 %v552
  %v631 = vpop.f32.mrf.mxu0
  %v632 = vadd.f32 0.0, %v631
  %v633 = vpop.f32.mrf.mxu0
  %634 = vmatprep.mubr.f32.mxu0 0.0
  %635 = vmatmul.mubr.f32.gmra.mxu0 %v555
  %v636 = vpop.f32.mrf.mxu0
  %v637 = vadd.f32 0.0, %v636
  %v638 = vpop.f32.mrf.mxu0
  %639 = vmatprep.mubr.f32.mxu0 0.0
  %640 = vmatmul.mubr.f32.gmra.mxu0 %v558
  %v641 = vpop.f32.mrf.mxu0
  %v642 = vadd.f32 0.0, %v641
  %v643 = vpop.f32.mrf.mxu0
  %644 = vdwg.mxu0
  %645 = vst.msk [vmem:[%s2] sm:$0xff] %vm83, %v514
  %646 = vst.msk [vmem:[%s2 + $0x8] sm:$0xff] %vm83, %v519
  %647 = vst.msk [vmem:[%s2 + $0x10] sm:$0xff] %vm83, %v524
  %648 = vst.msk [vmem:[%s2 + $0x18] sm:$0xff] %vm83, %v529
  %649 = vst.msk [vmem:[%s2 + $0x20] sm:$0xff] %vm83, %v627
  %650 = vst.msk [vmem:[%s2 + $0x28] sm:$0xff] %vm83, %v632
  %651 = vst.msk [vmem:[%s2 + $0x30] sm:$0xff] %vm83, %v637
  %652 = vst.msk [vmem:[%s2 + $0x38] sm:$0xff] %vm83, %v642
  // Predicated region
  $region10: #{timesformer_causal_self_attention.3} parent=0 // pred_check
    _
  $region11: #{timesformer_causal_self_attention.3} parent=0 // pred_check_branch
    %654 = sbr.rel (0) target = $region13
  $region12: #{timesformer_causal_self_attention.3} parent=0 // pred_region
    _
  $region13: #{timesformer_causal_self_attention.3} parent=0 // pred_fallthru
    _
  // Predicated region
  $region14: #{timesformer_causal_self_attention.3} parent=0 // pred_check
    _
  $region15: #{timesformer_causal_self_attention.3} parent=0 // pred_check_branch
    %656 = sbr.rel (0) target = $region17
  $region16: #{timesformer_causal_self_attention.3} parent=0 // pred_region
    _
  $region17: #{timesformer_causal_self_attention.3} parent=0 // pred_fallthru
    _

</llo_original>
